<compile_context>
chip_gen: v6e
topology: v6e:2x2x1
jax: 0.10.0
libtpu: 0.0.40
codegen_flags: <defaults>
</compile_context>

<pallas_src>
import jax
import jax.numpy as jnp
from jax.experimental import pallas as pl
from jax.experimental.pallas import tpu as pltpu

_SUBLANE = 8  # f32 sublane count


def _round_up(n, m):
    return ((n + m - 1) // m) * m


def _cdiv(a, b):
    return (a + b - 1) // b


def _mlp_kernel(x_ref, w1_ref, b1_ref, w2_ref, b2_ref, o_ref):
    # Cast x after the block DMA (no-op for f32; free VPU filler when the
    # weights are bf16).  Both matmuls accumulate in f32 on the MXU; bias
    # adds + ReLU stay f32 on the VPU.
    x = x_ref[...].astype(w1_ref.dtype)
    h = jnp.dot(x, w1_ref[...], preferred_element_type=jnp.float32)
    h = jnp.maximum(h + b1_ref[...], 0.0)
    out = jnp.dot(h.astype(w2_ref.dtype), w2_ref[...],
                  preferred_element_type=jnp.float32)
    o_ref[...] = (out + b2_ref[...]).astype(o_ref.dtype)


def _vmem_caps():
    """(tiling budget, vmem_limit_bytes), generation-aware."""
    try:
        cap = int(pltpu.get_tpu_info().vmem_capacity_bytes)
    except Exception:
        cap = 64 * 1024 * 1024  # conservative fallback (v7x-sized)
    return (cap * 7) // 10, (cap * 17) // 20


def prepare_ontology_params(w1, b1, w2, b2, compute_dtype=None):
    """One-time weight prep (hoisted out of the per-call path).

    w1: [input, hidden], b1: [hidden], w2: [hidden, output], b2: [output].
    compute_dtype (e.g. jnp.bfloat16) applies to the resident weights only;
    activations stay f32 at the kernel boundary and accumulation is f32.
    """
    cdt = w1.dtype if compute_dtype is None else compute_dtype
    return (w1.astype(cdt),
            b1.astype(jnp.float32).reshape(1, -1),
            w2.astype(cdt),
            b2.astype(jnp.float32).reshape(1, -1))


def ontology_model_forward(x, params, *, block_batch=512):
    """Fused forward pass: relu(x @ w1 + b1) @ w2 + b2.

    x: [B, input_size]; params from prepare_ontology_params().
    """
    w1, b1, w2, b2 = params
    B, K = x.shape
    H = w1.shape[1]
    N = w2.shape[1]
    assert w1.shape[0] == K and w2.shape[0] == H
    out_dtype = x.dtype
    wbytes = jnp.dtype(w1.dtype).itemsize

    vmem_budget, vmem_limit = _vmem_caps()

    # --- VMEM accounting ----------------------------------------------------
    # Resident weights/biases are double-buffered by the pipeline even with
    # constant index_maps -> count them twice.
    weight_bytes = 2 * ((K * H + H * N) * wbytes + (H + N) * 4)
    # Per batch-row: double-buffered x and out tiles, plus the in-kernel f32
    # hidden activation, f32 pre-cast output, and the in-kernel x cast copy.
    per_row_bytes = (2 * K * 4 + 2 * N * jnp.dtype(out_dtype).itemsize
                     + H * 4 + N * 4 + K * wbytes)
    avail = vmem_budget - weight_bytes
    # TODO(synk): no K/H-reduction-tiled fallback; models whose weights alone
    # exceed the VMEM budget would need a 3-D grid with an accumulator.
    if avail > 0:
        tb_cap = max(_SUBLANE, (avail // per_row_bytes) // _SUBLANE * _SUBLANE)
    else:
        tb_cap = _SUBLANE

    # --- batch tiling: ceil-split of the real batch, no whole-tile padding ---
    B8 = _round_up(B, _SUBLANE)
    tb_target = max(_SUBLANE,
                    min(_round_up(block_batch, _SUBLANE), tb_cap, B8))
    num_tiles = _cdiv(B8, tb_target)
    if num_tiles > 1 and num_tiles % 2 == 1:
        num_tiles += 1          # balance the parallel axis across v7x's 2 TCs
    TB = _round_up(_cdiv(B8, num_tiles), _SUBLANE)
    num_tiles = _cdiv(B8, TB)
    B_pad = num_tiles * TB

    if num_tiles == 1:
        # Grid-free path: whole (completely unpadded) arrays pinned in VMEM,
        # single kernel invocation, no pipeline prologue/epilogue, no
        # pad/slice passes in the wrapper at all.
        return pl.pallas_call(
            _mlp_kernel,
            out_shape=jax.ShapeDtypeStruct((B, N), out_dtype),
            in_specs=[pl.BlockSpec(memory_space=pltpu.MemorySpace.VMEM)] * 5,
            out_specs=pl.BlockSpec(memory_space=pltpu.MemorySpace.VMEM),
            compiler_params=pltpu.CompilerParams(vmem_limit_bytes=vmem_limit),
        )(x, w1, b1, w2, b2)

    # Batch-tiled path: x / out stream per step with unpadded feature dims
    # (block last dim == full array dim is legal); weights & biases stay
    # VMEM-resident via constant index_maps.
    x_p = x if B_pad == B else jnp.pad(x, ((0, B_pad - B), (0, 0)))
    out_p = pl.pallas_call(
        _mlp_kernel,
        out_shape=jax.ShapeDtypeStruct((B_pad, N), out_dtype),
        grid=(num_tiles,),
        in_specs=[
            pl.BlockSpec((TB, K), lambda i: (i, 0)),   # x tile (full K)
            pl.BlockSpec((K, H), lambda i: (0, 0)),    # w1 (resident)
            pl.BlockSpec((1, H), lambda i: (0, 0)),    # b1 (resident)
            pl.BlockSpec((H, N), lambda i: (0, 0)),    # w2 (resident)
            pl.BlockSpec((1, N), lambda i: (0, 0)),    # b2 (resident)
        ],
        out_specs=pl.BlockSpec((TB, N), lambda i: (i, 0)),  # full-N store
        compiler_params=pltpu.CompilerParams(
            dimension_semantics=("parallel",),   # megacore split on v7x
            vmem_limit_bytes=vmem_limit,
        ),
    )(x_p, w1, b1, w2, b2)
    return out_p if B_pad == B else out_p[:B]


if __name__ == "__main__":
    key = jax.random.PRNGKey(0)
    kx, kw1, kb1, kw2, kb2, kx2, kx3 = jax.random.split(key, 7)

    input_size, hidden_size, output_size = 32, 64, 16

    # Deterministic synthetic parameters (PyTorch-style uniform init bounds).
    bound1 = 1.0 / (input_size ** 0.5)
    w1 = jax.random.uniform(kw1, (input_size, hidden_size),
                            minval=-bound1, maxval=bound1, dtype=jnp.float32)
    b1 = jax.random.uniform(kb1, (hidden_size,),
                            minval=-bound1, maxval=bound1, dtype=jnp.float32)
    bound2 = 1.0 / (hidden_size ** 0.5)
    w2 = jax.random.uniform(kw2, (hidden_size, output_size),
                            minval=-bound2, maxval=bound2, dtype=jnp.float32)
    b2 = jax.random.uniform(kb2, (output_size,),
                            minval=-bound2, maxval=bound2, dtype=jnp.float32)

    params_f32 = prepare_ontology_params(w1, b1, w2, b2)

    def ref_fn(x):
        return jnp.maximum(x @ w1 + b1, 0.0) @ w2 + b2

    # (1) small batch -> grid-free path, zero padding / slicing.
    x_small = jax.random.normal(kx, (8, input_size), dtype=jnp.float32)
    out_small = jax.block_until_ready(
        ontology_model_forward(x_small, params_f32))
    assert out_small.shape == (8, output_size)
    assert jnp.allclose(out_small, ref_fn(x_small), atol=1e-5, rtol=1e-5)

    # (2) larger batch -> batch-tiled path (4 tiles of 96: even split for
    #     v7x megacore, exact batch -> no padding, no slice).
    x_big = jax.random.normal(kx2, (384, input_size), dtype=jnp.float32)
    out_big = jax.block_until_ready(
        ontology_model_forward(x_big, params_f32, block_batch=128))
    assert out_big.shape == (384, output_size)
    assert jnp.allclose(out_big, ref_fn(x_big), atol=1e-5, rtol=1e-5)

    # (3) ragged batch (not a multiple of 8) exercising minimal batch padding.
    x_rag = jax.random.normal(kx3, (100, input_size), dtype=jnp.float32)
    out_rag = jax.block_until_ready(
        ontology_model_forward(x_rag, params_f32, block_batch=48))
    assert out_rag.shape == (100, output_size)
    assert jnp.allclose(out_rag, ref_fn(x_rag), atol=1e-5, rtol=1e-5)

    # (4) bf16 resident weights (x stays f32 at the boundary, cast in-kernel,
    #     f32 MXU accumulation).
    params_bf16 = prepare_ontology_params(w1, b1, w2, b2,
                                          compute_dtype=jnp.bfloat16)
    out_bf16 = jax.block_until_ready(
        ontology_model_forward(x_big, params_bf16, block_batch=128))
    assert out_bf16.shape == (384, output_size)
    assert jnp.allclose(out_bf16, ref_fn(x_big), atol=5e-2, rtol=5e-2)

    print("KERNEL_OK")
</pallas_src>

<mosaic_0001>
module attributes {stable_mosaic.version = 11 : i64} {
  func.func @_mlp_kernel(%arg0: memref<8x32xf32, #tpu.memory_space<vmem>>, %arg1: memref<32x64xf32, #tpu.memory_space<vmem>>, %arg2: memref<1x64xf32, #tpu.memory_space<vmem>>, %arg3: memref<64x16xf32, #tpu.memory_space<vmem>>, %arg4: memref<1x16xf32, #tpu.memory_space<vmem>>, %arg5: memref<8x16xf32, #tpu.memory_space<vmem>>) attributes {dimension_semantics = [], scalar_prefetch = 0 : i64, scratch_operands = 0 : i64, tpu.core_type = #tpu.core_type<tc>} {
    %c0 = arith.constant 0 : index
    %c0_0 = arith.constant 0 : index
    %0 = vector.load %arg0[%c0, %c0_0] : memref<8x32xf32, #tpu.memory_space<vmem>>, vector<8x32xf32>
    %c0_1 = arith.constant 0 : index
    %c0_2 = arith.constant 0 : index
    %1 = vector.load %arg1[%c0_1, %c0_2] : memref<32x64xf32, #tpu.memory_space<vmem>>, vector<32x64xf32>
    %cst = arith.constant dense<0.000000e+00> : vector<8x64xf32>
    %2 = tpu.matmul %0, %1, %cst {dimension_numbers = #tpu.dot_dimension_numbers<[1], [0], [0], [1], [0, 0, 1, 1], [], []>} : vector<8x32xf32>, vector<32x64xf32>, vector<8x64xf32> -> vector<8x64xf32>
    %c0_3 = arith.constant 0 : index
    %c0_4 = arith.constant 0 : index
    %3 = vector.load %arg2[%c0_3, %c0_4] : memref<1x64xf32, #tpu.memory_space<vmem>>, vector<1x64xf32>
    %4 = vector.broadcast %3 : vector<1x64xf32> to vector<8x64xf32>
    %5 = arith.addf %2, %4 : vector<8x64xf32>
    %cst_5 = arith.constant 0.000000e+00 : f32
    %6 = vector.broadcast %cst_5 : f32 to vector<8x64xf32>
    %7 = arith.maximumf %5, %6 : vector<8x64xf32>
    %c0_6 = arith.constant 0 : index
    %c0_7 = arith.constant 0 : index
    %8 = vector.load %arg3[%c0_6, %c0_7] : memref<64x16xf32, #tpu.memory_space<vmem>>, vector<64x16xf32>
    %cst_8 = arith.constant dense<0.000000e+00> : vector<8x16xf32>
    %9 = tpu.matmul %7, %8, %cst_8 {dimension_numbers = #tpu.dot_dimension_numbers<[1], [0], [0], [1], [0, 0, 1, 1], [], []>} : vector<8x64xf32>, vector<64x16xf32>, vector<8x16xf32> -> vector<8x16xf32>
    %c0_9 = arith.constant 0 : index
    %c0_10 = arith.constant 0 : index
    %10 = vector.load %arg4[%c0_9, %c0_10] : memref<1x16xf32, #tpu.memory_space<vmem>>, vector<1x16xf32>
    %11 = vector.broadcast %10 : vector<1x16xf32> to vector<8x16xf32>
    %12 = arith.addf %9, %11 : vector<8x16xf32>
    %c0_11 = arith.constant 0 : index
    %c0_12 = arith.constant 0 : index
    %13 = vector.load %arg5[%c0_11, %c0_12] : memref<8x16xf32, #tpu.memory_space<vmem>>, vector<8x16xf32>
    tpu.vector_store %arg5[%c0_11, %c0_12], %12 {strides = array<i32>} : memref<8x16xf32, #tpu.memory_space<vmem>>, vector<8x16xf32>,
    return
  }
}

</mosaic_0001>

<llo_original>
// kernel: tpu_custom_call.1
$region0: #{tpu_custom_call.1}
  #allocation0 [shape = 'u32[]', space=smem, size = 0x4, offset = 0x4, fixed_abs, tag = 'smem constant byte address 0x4 - core index']
  #allocation1 [shape = 'u32[144,128]{1,0:T(1,128)}', space=vmem, size = 0x12000, scoped, tag = 'internal scratch']
  %s0 = inlined_call_operand.vmem [shape: f32[8,32], index: 0, kind: input, shape index: {}]
  %s1 = inlined_call_operand.vmem [shape: f32[32,64], index: 1, kind: input, shape index: {}]
  %s2 = inlined_call_operand.vmem [shape: f32[1,64], index: 2, kind: input, shape index: {}]
  %s3 = inlined_call_operand.vmem [shape: f32[64,16], index: 3, kind: input, shape index: {}]
  %s4 = inlined_call_operand.vmem [shape: f32[1,16], index: 4, kind: input, shape index: {}]
  %s5 = inlined_call_operand.hbm [shape: f32[8,16], index: 5, kind: output, shape index: {}]
  %s6 = sld [smem:[#allocation0]]
  $region30: #{tpu_custom_call.1} parent=0
    _
  %s8 = ssub.s32 1, %s6
  %s9 = scalar_select 0, %s8, %s6
  $region1: #{tpu_custom_call.1} parent=0
    #allocation2 [shape = 'u8[4096]{0}', space=vmem, size = 0x1000, scoped, tag = 'output window, operand 0, single buffered']
    #allocation3 [shape = 's32[1]{0}', space=sflag, size = 0x4, scoped, tag = 'scoped memory for tpu_custom_call.1']
    %10 = vsyncpa [#allocation3], 0
    // Predicated region
    $region2: #{tpu_custom_call.1} parent=1 // pred_check
      _
    $region3: #{tpu_custom_call.1} parent=1 // pred_check_branch
      %12 = sbr.rel (0) target = $region5
    $region4: #{tpu_custom_call.1} parent=1 // pred_region
      _
    $region5: #{tpu_custom_call.1} parent=1 // pred_fallthru
      _
    // Predicated region
    $region6: #{tpu_custom_call.1} parent=1 // pred_check
      _
    $region7: #{tpu_custom_call.1} parent=1 // pred_check_branch
      %14 = sbr.rel (0) target = $region9
    $region8: #{tpu_custom_call.1} parent=1 // pred_region
      _
    $region9: #{tpu_custom_call.1} parent=1 // pred_fallthru
      _
    // Predicated region
    $region10: #{tpu_custom_call.1} parent=1 // pred_check
      _
    $region11: #{tpu_custom_call.1} parent=1 // pred_check_branch
      %16 = sbr.rel (0) target = $region13
    $region12: #{tpu_custom_call.1} parent=1 // pred_region
      _
    $region13: #{tpu_custom_call.1} parent=1 // pred_fallthru
      _
    // Predicated region
    $region14: #{tpu_custom_call.1} parent=1 // pred_check
      _
    $region15: #{tpu_custom_call.1} parent=1 // pred_check_branch
      %18 = sbr.rel (0) target = $region17
    $region16: #{tpu_custom_call.1} parent=1 // pred_region
      _
    $region17: #{tpu_custom_call.1} parent=1 // pred_fallthru
      _
    // Predicated region
    $region18: #{tpu_custom_call.1} parent=1 // pred_check
      _
    $region19: #{tpu_custom_call.1} parent=1 // pred_check_branch
      %20 = sbr.rel (0) target = $region21
    $region20: #{tpu_custom_call.1} parent=1 // pred_region
      _
    $region21: #{tpu_custom_call.1} parent=1 // pred_fallthru
      _
    %v21 = vld [vmem:[%s0] sm:$0xff]
    %v22 = vld [vmem:[%s1] sm:$0xff]
    %v23 = vld [vmem:[%s1 + $0x8] sm:$0xff]
    %v24 = vld [vmem:[%s1 + $0x10] sm:$0xff]
    %v25 = vld [vmem:[%s1 + $0x18] sm:$0xff]
    %v26 = vld [vmem:[%s2] sm:$0x1]
    %v28 = vlaneseq
    %v29 = vshrl.u32 %v28, 7
    %v30 = vsub.s32 0, %v29
    %v31 = vrot.slane %v26, %v30
    %vm33 = vcmask 261120
    %v35 = vsel %vm33, %v21, 0
    %37 = vmatprep.subr.mxu0 0.0
    %38 = vmatpush1.msra.mxu0 0.0
    %39 = vmatprep.subr.mxu0 0.0
    %40 = vmatpush1.msra.mxu0 0.0
    %41 = vmatprep.subr.mxu0 0.0
    %42 = vmatpush1.msra.mxu0 0.0
    %43 = vmatprep.subr.mxu0 0.0
    %44 = vmatpush1.msra.mxu0 0.0
    %45 = vmatprep.subr.mxu0 0.0
    %46 = vmatpush1.msra.mxu0 0.0
    %47 = vmatprep.subr.mxu0 0.0
    %48 = vmatpush1.msra.mxu0 0.0
    %49 = vmatprep.subr.mxu0 0.0
    %50 = vmatpush1.msra.mxu0 0.0
    %51 = vmatprep.subr.mxu0 0.0
    %52 = vmatpush1.msra.mxu0 0.0
    %53 = vmatprep.subr.mxu0 0.0
    %54 = vmatpush1.msra.mxu0 0.0
    %55 = vmatprep.subr.mxu0 0.0
    %56 = vmatpush1.msra.mxu0 0.0
    %57 = vmatprep.subr.mxu0 0.0
    %58 = vmatpush1.msra.mxu0 0.0
    %59 = vmatprep.subr.mxu0 0.0
    %60 = vmatpush1.msra.mxu0 0.0
    %61 = vmatprep.subr.mxu0 0.0
    %62 = vmatpush1.msra.mxu0 %v25
    %63 = vmatprep.subr.mxu0 0.0
    %64 = vmatpush1.msra.mxu0 %v24
    %65 = vmatprep.subr.mxu0 0.0
    %66 = vmatpush1.msra.mxu0 %v23
    %67 = vmatprep.subr.mxu0 0.0
    %68 = vmatpush1.msra.mxu0 %v22
    %69 = vmatprep.subr.mxu0 0.0
    %70 = vmatpush2.msra.mxu0 0.0
    %71 = vmatprep.subr.mxu0 0.0
    %72 = vmatpush2.msra.mxu0 0.0
    %73 = vmatprep.subr.mxu0 0.0
    %74 = vmatpush2.msra.mxu0 0.0
    %75 = vmatprep.subr.mxu0 0.0
    %76 = vmatpush2.msra.mxu0 0.0
    %77 = vmatprep.subr.mxu0 0.0
    %78 = vmatpush2.msra.mxu0 0.0
    %79 = vmatprep.subr.mxu0 0.0
    %80 = vmatpush2.msra.mxu0 0.0
    %81 = vmatprep.subr.mxu0 0.0
    %82 = vmatpush2.msra.mxu0 0.0
    %83 = vmatprep.subr.mxu0 0.0
    %84 = vmatpush2.msra.mxu0 0.0
    %85 = vmatprep.subr.mxu0 0.0
    %86 = vmatpush2.msra.mxu0 0.0
    %87 = vmatprep.subr.mxu0 0.0
    %88 = vmatpush2.msra.mxu0 0.0
    %89 = vmatprep.subr.mxu0 0.0
    %90 = vmatpush2.msra.mxu0 0.0
    %91 = vmatprep.subr.mxu0 0.0
    %92 = vmatpush2.msra.mxu0 0.0
    %93 = vmatprep.subr.mxu0 0.0
    %94 = vmatpush2.msra.mxu0 0.0
    %95 = vmatprep.subr.mxu0 0.0
    %96 = vmatpush2.msra.mxu0 0.0
    %97 = vmatprep.subr.mxu0 0.0
    %98 = vmatpush2.msra.mxu0 0.0
    %99 = vmatprep.subr.mxu0 0.0
    %100 = vmatpush2.msra.mxu0 0.0
    %101 = vmatprep.mubr.f32.mxu0 0.0
    %102 = vmatmul.mubr.f32.gmra.mxu0 %v35
    %v103 = vpop.f32.mrf.mxu0
    %v104 = vadd.f32 %v31, %v103
    %v105 = vpop.f32.mrf.mxu0
    %106 = vdwg.mxu0
    %v107 = vmax.f32 %v104, 0.0
    %v108 = vld [vmem:[%s3] sm:$0xff]
    %v109 = vld [vmem:[%s3 + $0x8] sm:$0xff]
    %v110 = vld [vmem:[%s3 + $0x10] sm:$0xff]
    %v111 = vld [vmem:[%s3 + $0x18] sm:$0xff]
    %v112 = vld [vmem:[%s3 + $0x20] sm:$0xff]
    %v113 = vld [vmem:[%s3 + $0x28] sm:$0xff]
    %v114 = vld [vmem:[%s3 + $0x30] sm:$0xff]
    %v115 = vld [vmem:[%s3 + $0x38] sm:$0xff]
    %v116 = vld [vmem:[%s4] sm:$0x1]
    %v118 = vlaneseq
    %v119 = vshrl.u32 %v118, 7
    %v120 = vsub.s32 0, %v119
    %v121 = vrot.slane %v116, %v120
    %vm123 = vcmask 523264
    %v125 = vsel %vm123, %v107, 0
    %127 = vmatprep.subr.mxu0 0.0
    %128 = vmatpush1.msra.mxu0 0.0
    %129 = vmatprep.subr.mxu0 0.0
    %130 = vmatpush1.msra.mxu0 0.0
    %131 = vmatprep.subr.mxu0 0.0
    %132 = vmatpush1.msra.mxu0 0.0
    %133 = vmatprep.subr.mxu0 0.0
    %134 = vmatpush1.msra.mxu0 0.0
    %135 = vmatprep.subr.mxu0 0.0
    %136 = vmatpush1.msra.mxu0 0.0
    %137 = vmatprep.subr.mxu0 0.0
    %138 = vmatpush1.msra.mxu0 0.0
    %139 = vmatprep.subr.mxu0 0.0
    %140 = vmatpush1.msra.mxu0 0.0
    %141 = vmatprep.subr.mxu0 0.0
    %142 = vmatpush1.msra.mxu0 0.0
    %143 = vmatprep.subr.mxu0 0.0
    %144 = vmatpush1.msra.mxu0 %v115
    %145 = vmatprep.subr.mxu0 0.0
    %146 = vmatpush1.msra.mxu0 %v114
    %147 = vmatprep.subr.mxu0 0.0
    %148 = vmatpush1.msra.mxu0 %v113
    %149 = vmatprep.subr.mxu0 0.0
    %150 = vmatpush1.msra.mxu0 %v112
    %151 = vmatprep.subr.mxu0 0.0
    %152 = vmatpush1.msra.mxu0 %v111
    %153 = vmatprep.subr.mxu0 0.0
    %154 = vmatpush1.msra.mxu0 %v110
    %155 = vmatprep.subr.mxu0 0.0
    %156 = vmatpush1.msra.mxu0 %v109
    %157 = vmatprep.subr.mxu0 0.0
    %158 = vmatpush1.msra.mxu0 %v108
    %159 = vmatprep.subr.mxu0 0.0
    %160 = vmatpush2.msra.mxu0 0.0
    %161 = vmatprep.subr.mxu0 0.0
    %162 = vmatpush2.msra.mxu0 0.0
    %163 = vmatprep.subr.mxu0 0.0
    %164 = vmatpush2.msra.mxu0 0.0
    %165 = vmatprep.subr.mxu0 0.0
    %166 = vmatpush2.msra.mxu0 0.0
    %167 = vmatprep.subr.mxu0 0.0
    %168 = vmatpush2.msra.mxu0 0.0
    %169 = vmatprep.subr.mxu0 0.0
    %170 = vmatpush2.msra.mxu0 0.0
    %171 = vmatprep.subr.mxu0 0.0
    %172 = vmatpush2.msra.mxu0 0.0
    %173 = vmatprep.subr.mxu0 0.0
    %174 = vmatpush2.msra.mxu0 0.0
    %175 = vmatprep.subr.mxu0 0.0
    %176 = vmatpush2.msra.mxu0 0.0
    %177 = vmatprep.subr.mxu0 0.0
    %178 = vmatpush2.msra.mxu0 0.0
    %179 = vmatprep.subr.mxu0 0.0
    %180 = vmatpush2.msra.mxu0 0.0
    %181 = vmatprep.subr.mxu0 0.0
    %182 = vmatpush2.msra.mxu0 0.0
    %183 = vmatprep.subr.mxu0 0.0
    %184 = vmatpush2.msra.mxu0 0.0
    %185 = vmatprep.subr.mxu0 0.0
    %186 = vmatpush2.msra.mxu0 0.0
    %187 = vmatprep.subr.mxu0 0.0
    %188 = vmatpush2.msra.mxu0 0.0
    %189 = vmatprep.subr.mxu0 0.0
    %190 = vmatpush2.msra.mxu0 0.0
    %191 = vmatprep.mubr.f32.mxu0 0.0
    %192 = vmatmul.mubr.f32.gmra.mxu0 %v125
    %v193 = vpop.f32.mrf.mxu0
    %v194 = vadd.f32 %v121, %v193
    %v195 = vpop.f32.mrf.mxu0
    %196 = vdwg.mxu0
    %vm197 = vcmask 130048
    %198 = vst.msk [vmem:[#allocation2] sm:$0xff] %vm197, %v194
    // Predicated region
    $region22: #{tpu_custom_call.1} parent=1 // pred_check
      _
    $region23: #{tpu_custom_call.1} parent=1 // pred_check_branch
      %200 = sbr.rel (0) target = $region25
    $region24: #{tpu_custom_call.1} parent=1 // pred_region
      %s202 = ssub.s32 128, 128
      %203 = vsyncadd [#allocation3], %s202
      %s205 = sshll.u32 [#allocation2], 4
      %s206 = int_to_ptr.vmem [resolvable:$true] %s205
      %208 = dma.vmem_to_hbm [thread:$0]  %s206, 128, %s5, [#allocation3]
    $region25: #{tpu_custom_call.1} parent=1 // pred_fallthru
      _
    // Predicated region
    $region26: #{tpu_custom_call.1} parent=1 // pred_check
      _
    $region27: #{tpu_custom_call.1} parent=1 // pred_check_branch
      %210 = sbr.rel (0) target = $region29
    $region28: #{tpu_custom_call.1} parent=1 // pred_region
      %211 = dma.done [#allocation3], 128
    $region29: #{tpu_custom_call.1} parent=1 // pred_fallthru
      _
    %212 = vsyncpa [#allocation3], 1

</llo_original>
